<compile_context>
chip_gen: v7x
topology: tpu7x:2x2x1
jax: 0.10.0
libtpu: 0.0.40
codegen_flags: <defaults>
</compile_context>

<pallas_src>
import functools

import jax
import jax.numpy as jnp
from jax import lax
from jax.experimental import pallas as pl
from jax.experimental.pallas import tpu as pltpu

_MIB = 1024 * 1024


# ---------------------------------------------------------------------------
# VMEM budgeting / tile planning
# ---------------------------------------------------------------------------
def _vmem_capacity_bytes():
    """Per-core VMEM capacity; conservative fallback if the query fails."""
    try:
        cap = getattr(pltpu.get_tpu_info(), "vmem_capacity_bytes", None)
        if cap:
            return int(cap)
    except Exception:
        pass
    return 64 * _MIB  # v7x per-TC VMEM (smallest of the three generations)


def _per_block_budget_f32():
    """Target f32 footprint of one x-block.

    Total kernel VMEM ~= (2 in + 2 out) double-buffered blocks + ~4 f32 temps,
    i.e. ~8-10 block-equivalents, so keep a single block at ~1-2 MiB (measured
    data shows >=85% of HBM roofline already at this size)."""
    scoped_target = min(_vmem_capacity_bytes() // 4, 24 * _MIB)
    return max(256 * 1024, min(2 * _MIB, scoped_target // 10))


def _mosaic_params(est_bytes, semantics):
    """CompilerParams with vmem_limit_bytes sized from the actual buffer math."""
    cap = _vmem_capacity_bytes()
    limit = int(min(max(est_bytes, 16 * _MIB), (cap * 3) // 4))
    return pltpu.CompilerParams(dimension_semantics=semantics,
                                vmem_limit_bytes=limit)


def _plan_tiles(B, C, HW, per_block_f32):
    """Choose an x-block (B, tc, thw).

    Returns (tc, thw, fused) where fused==True means thw == HW, so per-channel
    batch statistics can be computed in a single pass (fused train kernel).
    Channel tiles are multiples of 8 or == C; HW tiles are multiples of 128 or
    == HW (Mosaic (8, 128) tiling rule on the last two block dims)."""
    per_chan_f32 = B * HW * 4
    max_tc = per_block_f32 // per_chan_f32
    if max_tc >= C:
        return C, HW, True
    if max_tc >= 8:
        return int((max_tc // 8) * 8), HW, True
    if C <= 8 and C * per_chan_f32 <= 2 * per_block_f32:
        return C, HW, True                      # small C: accept <=2x budget
    # Minimum legal channel tile is over budget -> tile the HW (lane) axis too.
    tc = C if C < 8 else 8
    if HW % 128 == 0:
        n128 = HW // 128
        max_d = max(1, per_block_f32 // (B * tc * 128 * 4))
        d = 1
        for cand in range(min(n128, int(max_d)), 0, -1):
            if n128 % cand == 0:                # thw must divide HW (exact stats)
                d = cand
                break
        return tc, 128 * d, False
    # HW not a multiple of 128: cannot tile the lane axis; accept oversized block.
    # TODO(synk): tile the batch axis for very large B with non-128-multiple HW.
    return tc, HW, True


# ---------------------------------------------------------------------------
# Kernels
# ---------------------------------------------------------------------------
def _dsbn_train_kernel(x_ref, g_ref, b_ref, y_ref, m_ref, v_ref, *, eps, inv_count):
    """Fused batch-stats BN for one (B, tc, HW) block: one pass over x."""
    x = x_ref[...].astype(jnp.float32)                       # (B, tc, HW)
    # Batch-axis reduction first (plain VALU adds), then a single cross-lane
    # (XLU) reduce per channel block -- B x fewer XLU ops than reducing HW first.
    xs = jnp.sum(x, axis=0)                                  # (tc, HW)
    x2s = jnp.sum(x * x, axis=0)                             # (tc, HW)
    s1 = jnp.sum(xs, axis=-1, keepdims=True)                 # (tc, 1)
    s2 = jnp.sum(x2s, axis=-1, keepdims=True)                # (tc, 1)

    mean = s1 * jnp.float32(inv_count)
    var = jnp.maximum(s2 * jnp.float32(inv_count) - mean * mean, 0.0)  # biased
    inv_std = lax.rsqrt(var + jnp.float32(eps))              # EUP, cheap

    g = g_ref[...]                                           # (tc, 1) f32
    b = b_ref[...]                                           # (tc, 1) f32
    scale = g * inv_std
    shift = b - mean * scale

    y_ref[...] = (x * scale[None] + shift[None]).astype(y_ref.dtype)
    m_ref[...] = mean                                        # (tc, 1)
    v_ref[...] = var                                         # (tc, 1)


def _dsbn_stats_kernel(x_ref, s1_ref, s2_ref):
    """Accumulate per-channel sum / sum-of-squares over an HW-tiled grid.

    Grid is (channel_blocks, hw_blocks) with hw as trailing 'arbitrary'
    reduction axis; s1/s2 blocks stay resident across it (accumulator)."""
    @pl.when(pl.program_id(1) == 0)
    def _():
        s1_ref[...] = jnp.zeros_like(s1_ref)
        s2_ref[...] = jnp.zeros_like(s2_ref)

    x = x_ref[...].astype(jnp.float32)                       # (B, tc, thw)
    xs = jnp.sum(x, axis=0)                                  # batch first (VALU)
    x2s = jnp.sum(x * x, axis=0)
    s1_ref[...] += jnp.sum(xs, axis=-1, keepdims=True)       # (tc, 1)
    s2_ref[...] += jnp.sum(x2s, axis=-1, keepdims=True)      # (tc, 1)


def _dsbn_affine_kernel(x_ref, a_ref, b_ref, y_ref):
    """y = x * scale + shift with per-channel (tc, 1) scale/shift.

    Math in f32 for accuracy; on v6e/v7x a bf16-native variant (downcast
    scale/shift) would halve the VMEM temp at a small precision cost."""
    a = a_ref[...][None]                                     # (1, tc, 1) f32
    b = b_ref[...][None]
    y_ref[...] = (x_ref[...].astype(jnp.float32) * a + b).astype(y_ref.dtype)


# ---------------------------------------------------------------------------
# pallas_call wrappers
# ---------------------------------------------------------------------------
def _affine_pallas(x3, scale, shift, tc, thw):
    """Elementwise per-channel affine over a (channel, hw) 'parallel' grid."""
    B, C, HW = x3.shape
    grid = (pl.cdiv(C, tc), pl.cdiv(HW, thw))
    blk_in = B * tc * thw * x3.dtype.itemsize
    blk_f32 = B * tc * thw * 4
    est = 4 * blk_in + 2 * blk_f32 + 2 * _MIB
    a2 = scale.astype(jnp.float32).reshape(C, 1)
    b2 = shift.astype(jnp.float32).reshape(C, 1)
    return pl.pallas_call(
        _dsbn_affine_kernel,
        out_shape=jax.ShapeDtypeStruct((B, C, HW), x3.dtype),
        grid_spec=pltpu.PrefetchScalarGridSpec(
            num_scalar_prefetch=0,
            grid=grid,
            in_specs=[
                pl.BlockSpec((B, tc, thw), lambda c, h: (0, c, h)),
                pl.BlockSpec((tc, 1), lambda c, h: (c, 0)),
                pl.BlockSpec((tc, 1), lambda c, h: (c, 0)),
            ],
            out_specs=pl.BlockSpec((B, tc, thw), lambda c, h: (0, c, h)),
        ),
        compiler_params=_mosaic_params(est, ("parallel", "parallel")),
        cost_estimate=pl.CostEstimate(
            flops=2 * x3.size, transcendentals=0,
            bytes_accessed=2 * x3.size * x3.dtype.itemsize),
    )(x3, a2, b2)


def _train_fused(x3, gamma, beta, eps, tc):
    """Single-pass batch-stats BN: one grid axis over channel blocks."""
    B, C, HW = x3.shape
    inv_count = 1.0 / float(B * HW)
    g2 = gamma.astype(jnp.float32).reshape(C, 1)
    b2 = beta.astype(jnp.float32).reshape(C, 1)

    blk_in = B * tc * HW * x3.dtype.itemsize
    blk_f32 = B * tc * HW * 4
    est = 4 * blk_in + 4 * blk_f32 + 2 * _MIB

    kernel = functools.partial(_dsbn_train_kernel, eps=float(eps),
                               inv_count=inv_count)
    y, mean, var = pl.pallas_call(
        kernel,
        out_shape=(
            jax.ShapeDtypeStruct((B, C, HW), x3.dtype),
            jax.ShapeDtypeStruct((C, 1), jnp.float32),
            jax.ShapeDtypeStruct((C, 1), jnp.float32),
        ),
        grid_spec=pltpu.PrefetchScalarGridSpec(
            num_scalar_prefetch=0,
            grid=(pl.cdiv(C, tc),),
            in_specs=[
                pl.BlockSpec((B, tc, HW), lambda c: (0, c, 0)),
                pl.BlockSpec((tc, 1), lambda c: (c, 0)),
                pl.BlockSpec((tc, 1), lambda c: (c, 0)),
            ],
            out_specs=[
                pl.BlockSpec((B, tc, HW), lambda c: (0, c, 0)),
                pl.BlockSpec((tc, 1), lambda c: (c, 0)),
                pl.BlockSpec((tc, 1), lambda c: (c, 0)),
            ],
        ),
        compiler_params=_mosaic_params(est, ("parallel",)),
        cost_estimate=pl.CostEstimate(
            flops=8 * x3.size, transcendentals=C,
            bytes_accessed=2 * x3.size * x3.dtype.itemsize),
    )(x3, g2, b2)
    return y, mean.reshape(C), var.reshape(C)


def _train_twopass(x3, gamma, beta, eps, tc, thw):
    """Fallback for large B*HW: HW-tiled stats pass + affine normalize pass."""
    B, C, HW = x3.shape
    blk_in = B * tc * thw * x3.dtype.itemsize
    blk_f32 = B * tc * thw * 4
    est = 2 * blk_in + 3 * blk_f32 + 2 * _MIB

    s1, s2 = pl.pallas_call(
        _dsbn_stats_kernel,
        out_shape=(
            jax.ShapeDtypeStruct((C, 1), jnp.float32),
            jax.ShapeDtypeStruct((C, 1), jnp.float32),
        ),
        grid_spec=pltpu.PrefetchScalarGridSpec(
            num_scalar_prefetch=0,
            grid=(pl.cdiv(C, tc), pl.cdiv(HW, thw)),
            in_specs=[pl.BlockSpec((B, tc, thw), lambda c, h: (0, c, h))],
            out_specs=[
                pl.BlockSpec((tc, 1), lambda c, h: (c, 0)),
                pl.BlockSpec((tc, 1), lambda c, h: (c, 0)),
            ],
        ),
        compiler_params=_mosaic_params(est, ("parallel", "arbitrary")),
        cost_estimate=pl.CostEstimate(
            flops=4 * x3.size, transcendentals=0,
            bytes_accessed=x3.size * x3.dtype.itemsize),
    )(x3)

    inv_count = 1.0 / float(B * HW)
    mean = s1.reshape(C) * inv_count
    var = jnp.maximum(s2.reshape(C) * inv_count - mean * mean, 0.0)
    inv_std = 1.0 / jnp.sqrt(var + eps)
    scale = gamma.astype(jnp.float32) * inv_std
    shift = beta.astype(jnp.float32) - mean * scale
    y = _affine_pallas(x3, scale, shift, tc, thw)
    return y, mean, var


def dsbn_train_forward(x, gamma, beta, eps):
    """Returns (y, batch_mean, batch_var) with biased batch_var (as used for y)."""
    B, C, H, W = x.shape
    HW = H * W
    x3 = x.reshape(B, C, HW)
    tc, thw, fused = _plan_tiles(B, C, HW, _per_block_budget_f32())
    if fused:
        # Megacore (v7x has 2 TCs): keep >= 2 channel blocks when cheaply legal.
        if pl.cdiv(C, tc) == 1 and C >= 16 and (C // 2) % 8 == 0:
            tc = C // 2
        y, mean, var = _train_fused(x3, gamma, beta, eps, tc)
    else:
        y, mean, var = _train_twopass(x3, gamma, beta, eps, tc, thw)
    return y.reshape(B, C, H, W), mean, var


def dsbn_eval_forward(x, scale, shift):
    """Per-channel affine (running stats + weight/bias pre-folded in wrapper)."""
    B, C, H, W = x.shape
    HW = H * W
    x3 = x.reshape(B, C, HW)
    tc, thw, _ = _plan_tiles(B, C, HW, _per_block_budget_f32())
    # Megacore: ensure >= 2 grid steps when cheaply legal (v7x has 2 TCs).
    if pl.cdiv(C, tc) * pl.cdiv(HW, thw) == 1:
        if C >= 16 and (C // 2) % 8 == 0:
            tc = C // 2
        elif HW % 256 == 0:
            thw = HW // 2
    y = _affine_pallas(x3, scale, shift, tc, thw)
    return y.reshape(B, C, H, W)


# ---------------------------------------------------------------------------
# Module mirror
# ---------------------------------------------------------------------------
class DomainSpecificBatchNorm2d:
    """Forward-only mirror of _DomainSpecificBatchNorm (nn.BatchNorm2d per domain)."""

    def __init__(self, num_features, num_classes, eps=1e-5, momentum=0.1,
                 affine=True, track_running_stats=True):
        self.num_features = num_features
        self.num_classes = num_classes
        self.eps = float(eps)
        self.momentum = float(momentum)
        self.affine = affine
        self.track_running_stats = track_running_stats
        self.training = True
        # Per-domain parameters / buffers, PyTorch BatchNorm2d defaults.
        self.weight = jnp.ones((num_classes, num_features), jnp.float32)
        self.bias = jnp.zeros((num_classes, num_features), jnp.float32)
        self.running_mean = jnp.zeros((num_classes, num_features), jnp.float32)
        self.running_var = jnp.ones((num_classes, num_features), jnp.float32)

    def _check_input_dim(self, x):
        if x.ndim != 4:
            raise ValueError(f"expected 4D input (got {x.ndim}D input)")

    def __call__(self, x, domain_label):
        self._check_input_dim(x)
        d = domain_label
        if self.affine:
            gamma = self.weight[d]
            beta = self.bias[d]
        else:
            gamma = jnp.ones((self.num_features,), jnp.float32)
            beta = jnp.zeros((self.num_features,), jnp.float32)

        B, C, H, W = x.shape
        if self.training or not self.track_running_stats:
            y, batch_mean, batch_var = dsbn_train_forward(x, gamma, beta, self.eps)
            if self.track_running_stats:
                # Tiny (C,)-sized state update, done in plain JAX (not a kernel op).
                n = B * H * W
                unbiased_var = batch_var * (n / max(n - 1, 1))
                m = self.momentum
                self.running_mean = self.running_mean.at[d].set(
                    (1.0 - m) * self.running_mean[d] + m * batch_mean)
                self.running_var = self.running_var.at[d].set(
                    (1.0 - m) * self.running_var[d] + m * unbiased_var)
            return y
        else:
            scale = gamma / jnp.sqrt(self.running_var[d] + self.eps)
            shift = beta - self.running_mean[d] * scale
            return dsbn_eval_forward(x, scale, shift)


# ---------------------------------------------------------------------------
# Self-test
# ---------------------------------------------------------------------------
if __name__ == "__main__":
    import numpy as np

    key = jax.random.PRNGKey(0)
    B, C, H, W = 2, 4, 16, 16
    num_classes = 3
    k1, k2, k3, k4, k5 = jax.random.split(key, 5)

    x = jax.random.normal(k1, (B, C, H, W), dtype=jnp.float32)

    mod = DomainSpecificBatchNorm2d(C, num_classes)
    # Non-trivial per-domain parameters / running stats.
    mod.weight = 1.0 + 0.5 * jax.random.normal(k2, (num_classes, C), jnp.float32)
    mod.bias = 0.1 * jax.random.normal(k3, (num_classes, C), jnp.float32)
    mod.running_mean = 0.1 * jax.random.normal(k4, (num_classes, C), jnp.float32)
    mod.running_var = jax.random.uniform(k5, (num_classes, C), jnp.float32, 0.5, 1.5)

    xm = np.asarray(x)
    eps = mod.eps

    # ---- training mode: batch-statistics normalization + running-stat update ----
    mod.training = True
    d = 1
    old_rm = np.asarray(mod.running_mean).copy()
    old_rv = np.asarray(mod.running_var).copy()
    y_train = jax.block_until_ready(mod(x, d))

    mu = xm.mean(axis=(0, 2, 3))
    var_b = xm.var(axis=(0, 2, 3))  # biased
    g = np.asarray(mod.weight)[d]
    b = np.asarray(mod.bias)[d]
    ref_train = ((xm - mu[None, :, None, None]) / np.sqrt(var_b + eps)[None, :, None, None]
                 * g[None, :, None, None] + b[None, :, None, None])
    np.testing.assert_allclose(np.asarray(y_train), ref_train, rtol=1e-5, atol=1e-5)

    n = B * H * W
    exp_rm = old_rm.copy()
    exp_rv = old_rv.copy()
    exp_rm[d] = (1 - mod.momentum) * old_rm[d] + mod.momentum * mu
    exp_rv[d] = (1 - mod.momentum) * old_rv[d] + mod.momentum * var_b * n / (n - 1)
    np.testing.assert_allclose(np.asarray(mod.running_mean), exp_rm, rtol=1e-5, atol=1e-5)
    np.testing.assert_allclose(np.asarray(mod.running_var), exp_rv, rtol=1e-5, atol=1e-5)

    # ---- eval mode: running-statistics normalization for a different domain ----
    mod.training = False
    d2 = 2
    y_eval = jax.block_until_ready(mod(x, d2))
    rm = np.asarray(mod.running_mean)[d2]
    rv = np.asarray(mod.running_var)[d2]
    g2 = np.asarray(mod.weight)[d2]
    b2 = np.asarray(mod.bias)[d2]
    ref_eval = ((xm - rm[None, :, None, None]) / np.sqrt(rv + eps)[None, :, None, None]
                * g2[None, :, None, None] + b2[None, :, None, None])
    np.testing.assert_allclose(np.asarray(y_eval), ref_eval, rtol=1e-5, atol=1e-5)

    print("KERNEL_OK")
</pallas_src>

<mosaic_0001>
module attributes {stable_mosaic.version = 11 : i64} {
  func.func @_dsbn_train_kernel(%arg0: i32, %arg1: memref<2x4x256xf32, #tpu.memory_space<vmem>>, %arg2: memref<4x1xf32, #tpu.memory_space<vmem>>, %arg3: memref<4x1xf32, #tpu.memory_space<vmem>>, %arg4: memref<2x4x256xf32, #tpu.memory_space<vmem>>, %arg5: memref<4x1xf32, #tpu.memory_space<vmem>>, %arg6: memref<4x1xf32, #tpu.memory_space<vmem>>) attributes {dimension_semantics = [#tpu.dimension_semantics<parallel>], iteration_bounds = array<i64: 1>, scalar_prefetch = 0 : i64, scratch_operands = 0 : i64, tpu.core_type = #tpu.core_type<tc>, window_params = [{transform_indices = @transform_0, window_bounds = array<i64: 2, 4, 256>}, {transform_indices = @transform_1, window_bounds = array<i64: 4, 1>}, {transform_indices = @transform_2, window_bounds = array<i64: 4, 1>}, {transform_indices = @transform_3, window_bounds = array<i64: 2, 4, 256>}, {transform_indices = @transform_4, window_bounds = array<i64: 4, 1>}, {transform_indices = @transform_5, window_bounds = array<i64: 4, 1>}]} {
    %c0 = arith.constant 0 : index
    %c0_0 = arith.constant 0 : index
    %c0_1 = arith.constant 0 : index
    %0 = vector.load %arg1[%c0, %c0_0, %c0_1] : memref<2x4x256xf32, #tpu.memory_space<vmem>>, vector<2x4x256xf32>
    %cst = arith.constant dense<0.000000e+00> : vector<4x256xf32>
    %1 = vector.multi_reduction <add>, %0, %cst [0] : vector<2x4x256xf32> to vector<4x256xf32>
    %2 = arith.mulf %0, %0 : vector<2x4x256xf32>
    %cst_2 = arith.constant dense<0.000000e+00> : vector<4x256xf32>
    %3 = vector.multi_reduction <add>, %2, %cst_2 [0] : vector<2x4x256xf32> to vector<4x256xf32>
    %cst_3 = arith.constant dense<0.000000e+00> : vector<4xf32>
    %4 = vector.multi_reduction <add>, %1, %cst_3 [1] : vector<4x256xf32> to vector<4xf32>
    %5 = vector.shape_cast %4 : vector<4xf32> to vector<4x1xf32>
    %cst_4 = arith.constant dense<0.000000e+00> : vector<4xf32>
    %6 = vector.multi_reduction <add>, %3, %cst_4 [1] : vector<4x256xf32> to vector<4xf32>
    %7 = vector.shape_cast %6 : vector<4xf32> to vector<4x1xf32>
    %cst_5 = arith.constant 0.001953125 : f32
    %8 = vector.broadcast %cst_5 : f32 to vector<4x1xf32>
    %9 = arith.mulf %5, %8 : vector<4x1xf32>
    %cst_6 = arith.constant 0.001953125 : f32
    %10 = vector.broadcast %cst_6 : f32 to vector<4x1xf32>
    %11 = arith.mulf %7, %10 : vector<4x1xf32>
    %12 = arith.mulf %9, %9 : vector<4x1xf32>
    %13 = arith.subf %11, %12 : vector<4x1xf32>
    %cst_7 = arith.constant 0.000000e+00 : f32
    %14 = vector.broadcast %cst_7 : f32 to vector<4x1xf32>
    %15 = arith.maximumf %13, %14 : vector<4x1xf32>
    %cst_8 = arith.constant 9.99999974E-6 : f32
    %16 = vector.broadcast %cst_8 : f32 to vector<4x1xf32>
    %17 = arith.addf %15, %16 : vector<4x1xf32>
    %18 = math.rsqrt %17 : vector<4x1xf32>
    %c0_9 = arith.constant 0 : index
    %c0_10 = arith.constant 0 : index
    %19 = vector.load %arg2[%c0_9, %c0_10] : memref<4x1xf32, #tpu.memory_space<vmem>>, vector<4x1xf32>
    %c0_11 = arith.constant 0 : index
    %c0_12 = arith.constant 0 : index
    %20 = vector.load %arg3[%c0_11, %c0_12] : memref<4x1xf32, #tpu.memory_space<vmem>>, vector<4x1xf32>
    %21 = arith.mulf %19, %18 : vector<4x1xf32>
    %22 = arith.mulf %9, %21 : vector<4x1xf32>
    %23 = arith.subf %20, %22 : vector<4x1xf32>
    %24 = vector.shape_cast %21 : vector<4x1xf32> to vector<1x4x1xf32>
    %25 = vector.broadcast %24 : vector<1x4x1xf32> to vector<2x4x256xf32>
    %26 = arith.mulf %0, %25 : vector<2x4x256xf32>
    %27 = vector.shape_cast %23 : vector<4x1xf32> to vector<1x4x1xf32>
    %28 = vector.broadcast %27 : vector<1x4x1xf32> to vector<2x4x256xf32>
    %29 = arith.addf %26, %28 : vector<2x4x256xf32>
    %c0_13 = arith.constant 0 : index
    %c0_14 = arith.constant 0 : index
    %c0_15 = arith.constant 0 : index
    %30 = vector.load %arg4[%c0_13, %c0_14, %c0_15] : memref<2x4x256xf32, #tpu.memory_space<vmem>>, vector<2x4x256xf32>
    tpu.vector_store %arg4[%c0_13, %c0_14, %c0_15], %29 {strides = array<i32>} : memref<2x4x256xf32, #tpu.memory_space<vmem>>, vector<2x4x256xf32>,
    %c0_16 = arith.constant 0 : index
    %c0_17 = arith.constant 0 : index
    %31 = vector.load %arg5[%c0_16, %c0_17] : memref<4x1xf32, #tpu.memory_space<vmem>>, vector<4x1xf32>
    tpu.vector_store %arg5[%c0_16, %c0_17], %9 {strides = array<i32>} : memref<4x1xf32, #tpu.memory_space<vmem>>, vector<4x1xf32>,
    %c0_18 = arith.constant 0 : index
    %c0_19 = arith.constant 0 : index
    %32 = vector.load %arg6[%c0_18, %c0_19] : memref<4x1xf32, #tpu.memory_space<vmem>>, vector<4x1xf32>
    tpu.vector_store %arg6[%c0_18, %c0_19], %15 {strides = array<i32>} : memref<4x1xf32, #tpu.memory_space<vmem>>, vector<4x1xf32>,
    return
  }
  func.func @transform_0(%arg0: i32) -> (i32, i32, i32) {
    %c0_i32 = arith.constant 0 : i32
    %c0_i32_0 = arith.constant 0 : i32
    %c0_i32_1 = arith.constant 0 : i32
    return %c0_i32, %arg0, %c0_i32_0 : i32, i32, i32
  }
  func.func @transform_1(%arg0: i32) -> (i32, i32) {
    %c0_i32 = arith.constant 0 : i32
    %c0_i32_0 = arith.constant 0 : i32
    return %arg0, %c0_i32 : i32, i32
  }
  func.func @transform_2(%arg0: i32) -> (i32, i32) {
    %c0_i32 = arith.constant 0 : i32
    %c0_i32_0 = arith.constant 0 : i32
    return %arg0, %c0_i32 : i32, i32
  }
  func.func @transform_3(%arg0: i32) -> (i32, i32, i32) {
    %c0_i32 = arith.constant 0 : i32
    %c0_i32_0 = arith.constant 0 : i32
    %c0_i32_1 = arith.constant 0 : i32
    return %c0_i32, %arg0, %c0_i32_0 : i32, i32, i32
  }
  func.func @transform_4(%arg0: i32) -> (i32, i32) {
    %c0_i32 = arith.constant 0 : i32
    %c0_i32_0 = arith.constant 0 : i32
    return %arg0, %c0_i32 : i32, i32
  }
  func.func @transform_5(%arg0: i32) -> (i32, i32) {
    %c0_i32 = arith.constant 0 : i32
    %c0_i32_0 = arith.constant 0 : i32
    return %arg0, %c0_i32 : i32, i32
  }
}

</mosaic_0001>

<llo_original>
// kernel: tpu_custom_call.1
$region0: #{tpu_custom_call.1}
  #allocation0 [shape = 'u32[]', space=smem, size = 0x4, offset = 0x4, fixed_abs, tag = 'smem constant byte address 0x4 - core index']
  #allocation1 [shape = 'u32[144,128]{1,0:T(1,128)}', space=vmem, size = 0x12000, scoped, tag = 'internal scratch']
  %s0 = inlined_call_operand.hbm [shape: f32[2,4,256], index: 0, kind: input, shape index: {}]
  %s1 = inlined_call_operand.vmem [shape: f32[4,1], index: 1, kind: input, shape index: {}]
  %s2 = inlined_call_operand.vmem [shape: f32[4,1], index: 2, kind: input, shape index: {}]
  %s3 = inlined_call_operand.hbm [shape: f32[2,4,256], index: 3, kind: output, shape index: {0}]
  %s4 = inlined_call_operand.vmem [shape: f32[4,1], index: 4, kind: output, shape index: {1}]
  %s5 = inlined_call_operand.vmem [shape: f32[4,1], index: 5, kind: output, shape index: {2}]
  %6 = xla_tuple %s3, %s4, %s5
  %s7 = sld [smem:[#allocation0]]
  $region42: #{tpu_custom_call.1} parent=0
    _
  %s9 = ssub.s32 1, %s7
  %s10 = scalar_select 0, %s9, %s7
  $region1: #{tpu_custom_call.1} parent=0
    #allocation2 [shape = 'u8[8192]{0}', space=vmem, size = 0x2000, scoped, tag = 'input window, operand 0, single buffered']
    #allocation3 [shape = 's32[1]{0}', space=sflag, size = 0x4, scoped, tag = 'scoped memory for tpu_custom_call.1']
    #allocation4 [shape = 's32[1]{0}', space=sflag, size = 0x4, scoped, tag = 'scoped memory for tpu_custom_call.1']
    #allocation5 [shape = 'u8[8192]{0}', space=vmem, size = 0x2000, scoped, tag = 'output window, operand 0, single buffered']
    %11 = vsyncpa [#allocation3], 0
    %12 = vsyncpa [#allocation4], 0
    // Predicated region
    $region2: #{tpu_custom_call.1} parent=1 // pred_check
      _
    $region3: #{tpu_custom_call.1} parent=1 // pred_check_branch
      %14 = sbr.rel (0) target = $region5
    $region4: #{tpu_custom_call.1} parent=1 // pred_region
      %s16 = ssub.s32 256, 256
      %17 = vsyncadd [#allocation3], %s16
      %s18 = sshll.u32 [#allocation2], 4
      %s19 = int_to_ptr.vmem [resolvable:$true] %s18
      %24 = dma.hbm_to_vmem [thread:$0]  %s0, 256, %s19, [#allocation3], 128, 128, 8
    $region5: #{tpu_custom_call.1} parent=1 // pred_fallthru
      _
    // Predicated region
    $region6: #{tpu_custom_call.1} parent=1 // pred_check
      _
    $region7: #{tpu_custom_call.1} parent=1 // pred_check_branch
      %26 = sbr.rel (0) target = $region9
    $region8: #{tpu_custom_call.1} parent=1 // pred_region
      _
    $region9: #{tpu_custom_call.1} parent=1 // pred_fallthru
      _
    // Predicated region
    $region10: #{tpu_custom_call.1} parent=1 // pred_check
      _
    $region11: #{tpu_custom_call.1} parent=1 // pred_check_branch
      %28 = sbr.rel (0) target = $region13
    $region12: #{tpu_custom_call.1} parent=1 // pred_region
      _
    $region13: #{tpu_custom_call.1} parent=1 // pred_fallthru
      _
    // Predicated region
    $region14: #{tpu_custom_call.1} parent=1 // pred_check
      _
    $region15: #{tpu_custom_call.1} parent=1 // pred_check_branch
      %30 = sbr.rel (0) target = $region17
    $region16: #{tpu_custom_call.1} parent=1 // pred_region
      %31 = dma.done [#allocation3], 256
    $region17: #{tpu_custom_call.1} parent=1 // pred_fallthru
      _
    %v32 = vld [vmem:[#allocation2] sm:$0xff]
    %v33 = vld [vmem:[#allocation2 + $0x8] sm:$0xff]
    %v36 = vcombine.high %v32, %v32
    %v37 = vcombine.high %v33, %v33
    %vm40 = vcmask 1043456
    %v41 = vsel %vm40, %v32, 0.0
    %v42 = vsel %vm40, %v33, 0.0
    %v43 = vadd.f32 %v41, %v42
    %v44 = vsel %vm40, %v36, 0.0
    %v45 = vsel %vm40, %v37, 0.0
    %v46 = vadd.f32 %v44, %v45
    %v47 = vmul.f32 %v32, %v32
    %v48 = vmul.f32 %v33, %v33
    %v51 = vcombine.high %v47, %v47
    %v52 = vcombine.high %v48, %v48
    %v55 = vsel %vm40, %v47, 0.0
    %v56 = vsel %vm40, %v48, 0.0
    %v57 = vadd.f32 %v55, %v56
    %v58 = vsel %vm40, %v51, 0.0
    %v59 = vsel %vm40, %v52, 0.0
    %v60 = vadd.f32 %v58, %v59
    %v61 = vsel %vm40, %v43, 0.0
    %v62 = vsel %vm40, %v46, 0.0
    %v63 = vadd.f32 %v61, %v62
    %64 = vadd.xlane.f32.xlu0 %v63
    %v65 = vpop.xlane.xlu0 %64
    %v66 = vsel %vm40, %v57, 0.0
    %v67 = vsel %vm40, %v60, 0.0
    %v68 = vadd.f32 %v66, %v67
    %69 = vadd.xlane.f32.xlu0 %v68
    %v70 = vpop.xlane.xlu0 %69
    %v71 = vmul.f32 %v65, 0.001953125
    %v72 = vmul.f32 %v70, 0.001953125
    %v73 = vmul.f32 %v71, %v71
    %v74 = vsub.f32 %v72, %v73
    %v75 = vmax.f32 %v74, 0.0
    %v76 = vadd.f32 %v75, 1e-05
    %v77 = vrsqrt.pop %v76
    %v78 = vld [vmem:[%s1] sm:$0xf]
    %v79 = vld [vmem:[%s2] sm:$0xf]
    %v80 = vmul.f32 %v78, %v77
    %v81 = vmul.f32 %v71, %v80
    %v82 = vsub.f32 %v79, %v81
    %84 = vset.pattern.permute.xlu0 0
    %85 = vperm.xlu0 %84, %v80
    %v86 = vpop.permute.xlu0 %85
    %v88 = vunpack.c.l.s4 839922192
    %v89 = vunpack.c.0.s8 %v88
    %v90 = vlaneseq
    %v91 = vshrl.u32 %v90, 7
    %v92 = vsub.s32 %v89, %v91
    %v93 = vrot.slane %v86, %v92
    %v95 = vmul.f32 %v32, %v93
    %v96 = vmul.f32 %v33, %v93
    %98 = vset.pattern.permute.xlu0 0
    %99 = vperm.xlu0 %98, %v82
    %v100 = vpop.permute.xlu0 %99
    %v102 = vunpack.c.l.s4 839922192
    %v103 = vunpack.c.0.s8 %v102
    %v104 = vlaneseq
    %v105 = vshrl.u32 %v104, 7
    %v106 = vsub.s32 %v103, %v105
    %v107 = vrot.slane %v100, %v106
    %v109 = vadd.f32 %v95, %v107
    %v110 = vadd.f32 %v96, %v107
    %111 = vst [vmem:[#allocation5] sm:$0xff] %v109
    %112 = vst [vmem:[#allocation5 + $0x8] sm:$0xff] %v110
    %vm113 = vcmask 3072
    %114 = vst.msk [vmem:[%s4] sm:$0xf] %vm113, %v71
    %115 = vst.msk [vmem:[%s5] sm:$0xf] %vm113, %v75
    // Predicated region
    $region18: #{tpu_custom_call.1} parent=1 // pred_check
      _
    $region19: #{tpu_custom_call.1} parent=1 // pred_check_branch
      %117 = sbr.rel (0) target = $region21
    $region20: #{tpu_custom_call.1} parent=1 // pred_region
      %s119 = ssub.s32 256, 256
      %120 = vsyncadd [#allocation4], %s119
      %s121 = sshll.u32 [#allocation5], 4
      %s122 = int_to_ptr.vmem [resolvable:$true] %s121
      %127 = dma.vmem_to_hbm [thread:$0]  %s122, 256, %s3, [#allocation4], 128, 128, 8
    $region21: #{tpu_custom_call.1} parent=1 // pred_fallthru
      _
    // Predicated region
    $region22: #{tpu_custom_call.1} parent=1 // pred_check
      _
    $region23: #{tpu_custom_call.1} parent=1 // pred_check_branch
      %129 = sbr.rel (0) target = $region25
    $region24: #{tpu_custom_call.1} parent=1 // pred_region
      _
    $region25: #{tpu_custom_call.1} parent=1 // pred_fallthru
      _
    // Predicated region
    $region26: #{tpu_custom_call.1} parent=1 // pred_check
      _
    $region27: #{tpu_custom_call.1} parent=1 // pred_check_branch
      %131 = sbr.rel (0) target = $region29
    $region28: #{tpu_custom_call.1} parent=1 // pred_region
      _
    $region29: #{tpu_custom_call.1} parent=1 // pred_fallthru
      _
    // Predicated region
    $region30: #{tpu_custom_call.1} parent=1 // pred_check
      _
    $region31: #{tpu_custom_call.1} parent=1 // pred_check_branch
      %133 = sbr.rel (0) target = $region33
    $region32: #{tpu_custom_call.1} parent=1 // pred_region
      %134 = dma.done [#allocation4], 256
    $region33: #{tpu_custom_call.1} parent=1 // pred_fallthru
      _
    // Predicated region
    $region34: #{tpu_custom_call.1} parent=1 // pred_check
      _
    $region35: #{tpu_custom_call.1} parent=1 // pred_check_branch
      %136 = sbr.rel (0) target = $region37
    $region36: #{tpu_custom_call.1} parent=1 // pred_region
      _
    $region37: #{tpu_custom_call.1} parent=1 // pred_fallthru
      _
    // Predicated region
    $region38: #{tpu_custom_call.1} parent=1 // pred_check
      _
    $region39: #{tpu_custom_call.1} parent=1 // pred_check_branch
      %138 = sbr.rel (0) target = $region41
    $region40: #{tpu_custom_call.1} parent=1 // pred_region
      _
    $region41: #{tpu_custom_call.1} parent=1 // pred_fallthru
      _
    %139 = vsyncpa [#allocation3], 1
    %140 = vsyncpa [#allocation4], 1

</llo_original>
